<compile_context>
chip_gen: v7x
topology: tpu7x:2x2x1
jax: 0.10.0
libtpu: 0.0.40
codegen_flags: <defaults>
</compile_context>

<pallas_src>
import functools

import jax
import jax.numpy as jnp
from jax.experimental import pallas as pl
from jax.experimental.pallas import tpu as pltpu

N_CONST = 3.5  # deterministic "parameter" n from TimesN.__init__

_LANES = 128


def _times_n_kernel(x_ref, o_ref, *, n):
    # Elementwise multiply on the VPU over the whole VMEM tile.
    o_ref[...] = x_ref[...] * n


def times_n(
    x,
    n: float,
    *,
    tile_rows: int = 2048,          # ~1 MiB f32 tile; good on v5e/v6e/v7x
    min_pallas_bytes: int = 1 << 18,  # below 256 KiB plain XLA wins
    force_pallas: bool = False,
    donate: bool = False,
):
    """Compute n * x with a Pallas TPU kernel (elementwise scale)."""
    n = float(n)

    # Non-floating dtypes: defer to plain JAX so promotion semantics
    # (int * float -> float) match the PyTorch module; the kernel path keeps
    # the input dtype and would truncate n.
    if not jnp.issubdtype(x.dtype, jnp.floating):
        return x * n

    # Small-input bypass: launch overhead dwarfs the work.
    if (not force_pallas) and x.size * x.dtype.itemsize < min_pallas_bytes:
        return x * n

    orig_shape = x.shape
    dtype = x.dtype
    total = x.size

    rows = pl.cdiv(total, _LANES)
    pad = rows * _LANES - total

    x_flat = x.reshape(-1)
    if pad:
        # Tiny tail pad only (uncommon: total not a multiple of 128).
        x_flat = jnp.pad(x_flat, (0, pad))
    x2d = x_flat.reshape(rows, _LANES)  # free reshape of a contiguous array

    # Sublane granularity per dtype (f32:8, bf16:16, 8-bit:32).
    sublane = {1: 32, 2: 16, 4: 8}.get(dtype.itemsize, 8)
    if rows <= tile_rows:
        block_rows = rows  # full-extent block is always legal
    else:
        block_rows = max(sublane, (tile_rows // sublane) * sublane)
    grid = (pl.cdiv(rows, block_rows),)

    kernel = functools.partial(_times_n_kernel, n=n)

    out2d = pl.pallas_call(
        kernel,
        out_shape=jax.ShapeDtypeStruct((rows, _LANES), dtype),
        grid_spec=pltpu.PrefetchScalarGridSpec(
            num_scalar_prefetch=0,
            grid=grid,
            in_specs=[pl.BlockSpec((block_rows, _LANES), lambda i: (i, 0))],
            out_specs=pl.BlockSpec((block_rows, _LANES), lambda i: (i, 0)),
        ),
        compiler_params=pltpu.CompilerParams(
            dimension_semantics=("parallel",),
        ),
        input_output_aliases=({0: 0} if (donate and pad == 0) else {}),
    )(x2d)

    if pad:
        return out2d.reshape(-1)[:total].reshape(orig_shape)
    return out2d.reshape(orig_shape)


if __name__ == "__main__":
    key = jax.random.PRNGKey(0)

    # 1) Canonical small NCHW input; force the Pallas path so the kernel runs.
    x = jax.random.normal(key, (2, 4, 16, 16), dtype=jnp.float32)
    y = jax.block_until_ready(times_n(x, N_CONST, force_pallas=True))
    assert y.shape == x.shape and y.dtype == x.dtype
    assert jnp.allclose(y, N_CONST * x, rtol=1e-6, atol=1e-6)

    # 2) Multi-block path with a ragged final block (rows=64, block_rows=24).
    k2 = jax.random.split(key)[0]
    x2 = jax.random.normal(k2, (2, 4, 32, 32), dtype=jnp.float32)
    y2 = jax.block_until_ready(times_n(x2, N_CONST, tile_rows=24, force_pallas=True))
    assert jnp.allclose(y2, N_CONST * x2, rtol=1e-6, atol=1e-6)

    # 3) Non-multiple-of-128 total (tail-pad path).
    k3 = jax.random.split(key)[1]
    x3 = jax.random.normal(k3, (3, 5, 7), dtype=jnp.float32)
    y3 = jax.block_until_ready(times_n(x3, N_CONST, force_pallas=True))
    assert y3.shape == x3.shape
    assert jnp.allclose(y3, N_CONST * x3, rtol=1e-6, atol=1e-6)

    print("KERNEL_OK")
</pallas_src>

<mosaic_0001>
module attributes {stable_mosaic.version = 11 : i64} {
  func.func @_times_n_kernel(%arg0: i32, %arg1: memref<16x128xf32, #tpu.memory_space<vmem>>, %arg2: memref<16x128xf32, #tpu.memory_space<vmem>>) attributes {dimension_semantics = [#tpu.dimension_semantics<parallel>], iteration_bounds = array<i64: 1>, scalar_prefetch = 0 : i64, scratch_operands = 0 : i64, tpu.core_type = #tpu.core_type<tc>, window_params = [{transform_indices = @transform_0, window_bounds = array<i64: 16, 128>}, {transform_indices = @transform_1, window_bounds = array<i64: 16, 128>}]} {
    %c0 = arith.constant 0 : index
    %c0_0 = arith.constant 0 : index
    %0 = vector.load %arg1[%c0, %c0_0] : memref<16x128xf32, #tpu.memory_space<vmem>>, vector<16x128xf32>
    %cst = arith.constant 3.500000e+00 : f32
    %1 = vector.broadcast %cst : f32 to vector<16x128xf32>
    %2 = arith.mulf %0, %1 : vector<16x128xf32>
    %c0_1 = arith.constant 0 : index
    %c0_2 = arith.constant 0 : index
    %3 = vector.load %arg2[%c0_1, %c0_2] : memref<16x128xf32, #tpu.memory_space<vmem>>, vector<16x128xf32>
    tpu.vector_store %arg2[%c0_1, %c0_2], %2 {strides = array<i32>} : memref<16x128xf32, #tpu.memory_space<vmem>>, vector<16x128xf32>,
    return
  }
  func.func @transform_0(%arg0: i32) -> (i32, i32) {
    %c0_i32 = arith.constant 0 : i32
    %c0_i32_0 = arith.constant 0 : i32
    return %arg0, %c0_i32 : i32, i32
  }
  func.func @transform_1(%arg0: i32) -> (i32, i32) {
    %c0_i32 = arith.constant 0 : i32
    %c0_i32_0 = arith.constant 0 : i32
    return %arg0, %c0_i32 : i32, i32
  }
}

</mosaic_0001>

<llo_original>
// kernel: tpu_custom_call.1
$region0: #{tpu_custom_call.1}
  #allocation0 [shape = 'u32[]', space=smem, size = 0x4, offset = 0x4, fixed_abs, tag = 'smem constant byte address 0x4 - core index']
  #allocation1 [shape = 'u32[144,128]{1,0:T(1,128)}', space=vmem, size = 0x12000, scoped, tag = 'internal scratch']
  %s0 = inlined_call_operand.hbm [shape: f32[16,128], index: 0, kind: input, shape index: {}]
  %s1 = inlined_call_operand.hbm [shape: f32[16,128], index: 1, kind: output, shape index: {}]
  %s2 = sld [smem:[#allocation0]]
  $region18: #{tpu_custom_call.1} parent=0
    _
  %s4 = ssub.s32 1, %s2
  %s5 = scalar_select 0, %s4, %s2
  $region1: #{tpu_custom_call.1} parent=0
    #allocation2 [shape = 'u8[8192]{0}', space=vmem, size = 0x2000, scoped, tag = 'input window, operand 0, single buffered']
    #allocation3 [shape = 's32[1]{0}', space=sflag, size = 0x4, scoped, tag = 'scoped memory for tpu_custom_call.1']
    #allocation4 [shape = 's32[1]{0}', space=sflag, size = 0x4, scoped, tag = 'scoped memory for tpu_custom_call.1']
    #allocation5 [shape = 'u8[8192]{0}', space=vmem, size = 0x2000, scoped, tag = 'output window, operand 0, single buffered']
    %6 = vsyncpa [#allocation3], 0
    %7 = vsyncpa [#allocation4], 0
    // Predicated region
    $region2: #{tpu_custom_call.1} parent=1 // pred_check
      _
    $region3: #{tpu_custom_call.1} parent=1 // pred_check_branch
      %9 = sbr.rel (0) target = $region5
    $region4: #{tpu_custom_call.1} parent=1 // pred_region
      %s11 = ssub.s32 256, 256
      %12 = vsyncadd [#allocation3], %s11
      %s13 = sshll.u32 [#allocation2], 4
      %s14 = int_to_ptr.vmem [resolvable:$true] %s13
      %19 = dma.hbm_to_vmem [thread:$0]  %s0, 256, %s14, [#allocation3], 128, 128, 8
    $region5: #{tpu_custom_call.1} parent=1 // pred_fallthru
      _
    // Predicated region
    $region6: #{tpu_custom_call.1} parent=1 // pred_check
      _
    $region7: #{tpu_custom_call.1} parent=1 // pred_check_branch
      %21 = sbr.rel (0) target = $region9
    $region8: #{tpu_custom_call.1} parent=1 // pred_region
      %22 = dma.done [#allocation3], 256
    $region9: #{tpu_custom_call.1} parent=1 // pred_fallthru
      _
    %v23 = vld [vmem:[#allocation2] sm:$0xff]
    %v24 = vld [vmem:[#allocation2 + $0x8] sm:$0xff]
    %v25 = vmul.f32 %v23, 3.5
    %v26 = vmul.f32 %v24, 3.5
    %27 = vst [vmem:[#allocation5] sm:$0xff] %v25
    %28 = vst [vmem:[#allocation5 + $0x8] sm:$0xff] %v26
    // Predicated region
    $region10: #{tpu_custom_call.1} parent=1 // pred_check
      _
    $region11: #{tpu_custom_call.1} parent=1 // pred_check_branch
      %30 = sbr.rel (0) target = $region13
    $region12: #{tpu_custom_call.1} parent=1 // pred_region
      %s32 = ssub.s32 256, 256
      %33 = vsyncadd [#allocation4], %s32
      %s34 = sshll.u32 [#allocation5], 4
      %s35 = int_to_ptr.vmem [resolvable:$true] %s34
      %40 = dma.vmem_to_hbm [thread:$0]  %s35, 256, %s1, [#allocation4], 128, 128, 8
    $region13: #{tpu_custom_call.1} parent=1 // pred_fallthru
      _
    // Predicated region
    $region14: #{tpu_custom_call.1} parent=1 // pred_check
      _
    $region15: #{tpu_custom_call.1} parent=1 // pred_check_branch
      %42 = sbr.rel (0) target = $region17
    $region16: #{tpu_custom_call.1} parent=1 // pred_region
      %43 = dma.done [#allocation4], 256
    $region17: #{tpu_custom_call.1} parent=1 // pred_fallthru
      _
    %44 = vsyncpa [#allocation3], 1
    %45 = vsyncpa [#allocation4], 1

</llo_original>
